<compile_context>
chip_gen: v5e
topology: v5e:2x2
jax: 0.10.0
libtpu: 0.0.40
codegen_flags: <defaults>
</compile_context>

<pallas_src>
import jax
import jax.numpy as jnp
import numpy as np
from jax.experimental import pallas as pl
from jax.experimental.pallas import tpu as pltpu


def _round_up(x, m):
    return ((x + m - 1) // m) * m


def _rvq_fused_kernel(x_ref, emb_ref, half_e2_ref, qout_ref, codes_ref,
                      res_ref, acc_ref):
    """One (row-tile, layer) grid step of fused residual VQ (eval forward)."""
    layer = pl.program_id(1)
    n_layers = pl.num_programs(1)

    # Initialize residual / accumulator once per row tile (layer axis innermost).
    @pl.when(layer == 0)
    def _():
        res_ref[...] = x_ref[...].astype(jnp.float32)
        acc_ref[...] = jnp.zeros_like(acc_ref)

    r = res_ref[...]                              # [tn, Dp] f32 (VMEM resident)
    e = emb_ref[0].astype(jnp.float32)            # [Kp, Dp] f32

    # argmin_k ||r - e_k||^2 == argmin_k (0.5*||e_k||^2 - r.e_k); the ||r||^2
    # term is constant over k and dropped; 0.5*||e||^2 is precomputed per layer
    # (padded codebook rows carry a huge sentinel so they never win).
    xe = jax.lax.dot_general(r, e, (((1,), (1,)), ((), ())),
                             preferred_element_type=jnp.float32)   # [tn, Kp]
    scores = half_e2_ref[0] - xe                                    # [tn, Kp]
    codes = jnp.argmin(scores, axis=-1).astype(jnp.int32)           # [tn]
    codes_ref[...] = codes[None, None, :]                           # lane-dense

    # Codebook lookup as an exact one-hot matmul (MXU friendly).
    onehot = (jax.lax.broadcasted_iota(jnp.int32, scores.shape, 1)
              == codes[:, None]).astype(jnp.float32)                # [tn, Kp]
    q = jax.lax.dot_general(onehot, e, (((1,), (0,)), ((), ())),
                            preferred_element_type=jnp.float32)     # [tn, Dp]

    res_ref[...] = r - q
    acc_ref[...] = acc_ref[...] + q

    @pl.when(layer == n_layers - 1)
    def _():
        qout_ref[...] = acc_ref[...].astype(qout_ref.dtype)


def rvq_quantize_flat(x_flat, embeddings, *, tile_n=256):
    """Fused eval-mode RVQ over flat rows.

    Args:
      x_flat: [N, D] float rows to quantize.
      embeddings: [n_q, K, D] codebooks.
      tile_n: preferred row-tile size (multiple of 128).
    Returns:
      quantized_out [N, D] (sum over layers), codes [n_q, N] int32.
    """
    N, D = x_flat.shape
    n_q, K, _ = embeddings.shape
    assert tile_n % 128 == 0, "tile_n must be a multiple of 128 (lane-dense codes)"

    D_pad = _round_up(D, 128)
    K_pad = _round_up(K, 128)
    n8 = _round_up(max(N, 8), 8)
    if n8 <= tile_n:
        tn = n8              # single full-extent tile for small N
        N_pad = n8
    else:
        tn = tile_n
        N_pad = _round_up(N, tn)

    # Zero-pad rows / feature dim / codebook rows.  Zero-padded D contributes
    # nothing to x.e or ||e||^2, so argmin and quantized values are unchanged.
    x_p = jnp.zeros((N_pad, D_pad), x_flat.dtype).at[:N, :D].set(x_flat)
    emb_p = jnp.zeros((n_q, K_pad, D_pad), jnp.float32).at[:, :K, :D].set(
        embeddings.astype(jnp.float32))

    half_e2 = 0.5 * jnp.sum(emb_p * emb_p, axis=-1)          # [n_q, K_pad]
    if K_pad > K:
        # Sentinel so padded codebook rows can never win the argmin.
        half_e2 = half_e2.at[:, K:].set(jnp.float32(1e30))
    half_e2 = half_e2[:, None, :]                            # [n_q, 1, K_pad]

    grid = (N_pad // tn, n_q)

    flops = 2 * 2 * N_pad * K_pad * D_pad * n_q              # two matmuls/layer
    bytes_accessed = (N_pad * D_pad * 4                      # x in
                      + n_q * K_pad * D_pad * 4              # codebooks
                      + N_pad * D_pad * 4                    # quantized out
                      + n_q * N_pad * 4)                     # codes out
    cost = pl.CostEstimate(flops=flops, transcendentals=0,
                           bytes_accessed=bytes_accessed)

    qout, codes = pl.pallas_call(
        _rvq_fused_kernel,
        out_shape=(
            jax.ShapeDtypeStruct((N_pad, D_pad), x_flat.dtype),
            jax.ShapeDtypeStruct((n_q, 1, N_pad), jnp.int32),
        ),
        grid_spec=pltpu.PrefetchScalarGridSpec(
            num_scalar_prefetch=0,
            grid=grid,
            in_specs=[
                # x tile: block index constant along the layer axis -> loaded
                # once per row tile and kept resident in VMEM.
                pl.BlockSpec((tn, D_pad), lambda i, l: (i, 0)),
                # Codebook of the current layer.
                pl.BlockSpec((1, K_pad, D_pad), lambda i, l: (l, 0, 0)),
                # Precomputed 0.5*||e||^2 (with padded-row sentinels).
                pl.BlockSpec((1, 1, K_pad), lambda i, l: (l, 0, 0)),
            ],
            out_specs=[
                # Sum of quantized layers, written at the last layer only.
                pl.BlockSpec((tn, D_pad), lambda i, l: (i, 0)),
                # Lane-dense codes: one (1, 1, tile_n) slab per (layer, tile).
                pl.BlockSpec((1, 1, tn), lambda i, l: (l, 0, i)),
            ],
            scratch_shapes=[
                pltpu.VMEM((tn, D_pad), jnp.float32),   # running residual
                pltpu.VMEM((tn, D_pad), jnp.float32),   # quantized accumulator
            ],
        ),
        compiler_params=pltpu.CompilerParams(
            dimension_semantics=("parallel", "arbitrary")),
        cost_estimate=cost,
    )(x_p, emb_p, half_e2)

    return qout[:N, :D], codes[:, 0, :N]


def make_rvq_params(num_quantizers, codebook_size, dim, epsilon=1e-5, seed=0):
    """Deterministic synthetic buffers matching EuclideanCodebook's shapes.

    Buffers per layer: embedding_sum [K, D], cluster_usage [K].
    embedding = embedding_sum / clamp(cluster_usage, epsilon)[:, None]
    """
    key = jax.random.PRNGKey(seed)
    embeddings = []
    for _ in range(num_quantizers):
        key, k_sum, k_use = jax.random.split(key, 3)
        embedding_sum = jax.random.normal(k_sum, (codebook_size, dim),
                                          dtype=jnp.float32)
        cluster_usage = jax.random.uniform(k_use, (codebook_size,),
                                           minval=0.5, maxval=1.5,
                                           dtype=jnp.float32)
        emb = embedding_sum / jnp.clip(cluster_usage, epsilon, None)[:, None]
        embeddings.append(emb)
    return jnp.stack(embeddings)   # [n_q, K, D]


def rvq_forward(x, embeddings, n_q=None, tile_n=256):
    """ResidualVectorQuantization.forward, eval mode.

    Args:
      x: [B, C, T] float input (PyTorch channels-first layout).
      embeddings: [num_quantizers, K, D] codebooks (D == C).
    Returns:
      (quantized_out [B, C, T], codes [n_q, B, T] int32,
       losses [n_q] (zeros in eval), metrics {}).
    """
    B, C, T = x.shape
    n_q = n_q or embeddings.shape[0]

    x_flat = jnp.transpose(x, (0, 2, 1)).reshape(B * T, C)
    qout, codes = rvq_quantize_flat(x_flat, embeddings[:n_q], tile_n=tile_n)

    quantized_out = jnp.transpose(qout.reshape(B, T, C), (0, 2, 1))
    codes_out = codes.reshape(n_q, B, T)
    losses = jnp.zeros((n_q,), dtype=x.dtype)     # eval mode: zero loss/layer
    return quantized_out, codes_out, losses, {}


def _rvq_reference(x, embeddings, n_q):
    """Pure-JAX reference of the same eval-mode forward, for checking."""
    B, C, T = x.shape
    x_flat = jnp.transpose(x, (0, 2, 1)).reshape(B * T, C)
    residual = x_flat
    quantized_out = jnp.zeros_like(x_flat)
    codes_all = []
    for i in range(n_q):
        emb = embeddings[i]
        d2 = jnp.sum((residual[:, None, :] - emb[None, :, :]) ** 2, axis=-1)
        codes = jnp.argmin(d2, axis=-1)
        q = emb[codes]
        residual = residual - q
        quantized_out = quantized_out + q
        codes_all.append(codes.reshape(B, T))
    quantized_out = jnp.transpose(quantized_out.reshape(B, T, C), (0, 2, 1))
    return quantized_out, jnp.stack(codes_all)


if __name__ == "__main__":
    # Small shapes consistent with the module: x [B, C, T] with C == dim.
    B, C, T = 2, 32, 16
    NUM_QUANTIZERS = 4
    CODEBOOK_SIZE = 64

    key = jax.random.PRNGKey(0)
    x = jax.random.normal(key, (B, C, T), dtype=jnp.float32)

    embeddings = make_rvq_params(NUM_QUANTIZERS, CODEBOOK_SIZE, C, seed=0)

    quantized_out, codes, losses, metrics = rvq_forward(x, embeddings)
    quantized_out = jax.block_until_ready(quantized_out)
    codes = jax.block_until_ready(codes)
    losses = jax.block_until_ready(losses)

    # Sanity check against a pure-JAX reference.
    ref_q, ref_codes = _rvq_reference(x, embeddings, NUM_QUANTIZERS)
    np.testing.assert_array_equal(np.asarray(codes), np.asarray(ref_codes))
    np.testing.assert_allclose(np.asarray(quantized_out), np.asarray(ref_q),
                               rtol=1e-5, atol=1e-5)
    assert quantized_out.shape == (B, C, T)
    assert codes.shape == (NUM_QUANTIZERS, B, T)
    assert losses.shape == (NUM_QUANTIZERS,)
    assert metrics == {}

    print("KERNEL_OK")
</pallas_src>

<mosaic_0001>
module attributes {stable_mosaic.version = 11 : i64} {
  func.func @_rvq_fused_kernel(%arg0: i32, %arg1: i32, %arg2: memref<32x128xf32, #tpu.memory_space<vmem>>, %arg3: memref<1x128x128xf32, #tpu.memory_space<vmem>>, %arg4: memref<1x1x128xf32, #tpu.memory_space<vmem>>, %arg5: memref<32x128xf32, #tpu.memory_space<vmem>>, %arg6: memref<1x1x32xi32, #tpu.memory_space<vmem>>, %arg7: memref<32x128xf32, #tpu.memory_space<vmem>>, %arg8: memref<32x128xf32, #tpu.memory_space<vmem>>) attributes {dimension_semantics = [#tpu.dimension_semantics<parallel>, #tpu.dimension_semantics<arbitrary>], iteration_bounds = array<i64: 1, 4>, scalar_prefetch = 0 : i64, scratch_operands = 2 : i64, tpu.core_type = #tpu.core_type<tc>, window_params = [{transform_indices = @transform_0, window_bounds = array<i64: 32, 128>}, {transform_indices = @transform_1, window_bounds = array<i64: 1, 128, 128>}, {transform_indices = @transform_2, window_bounds = array<i64: 1, 1, 128>}, {transform_indices = @transform_3, window_bounds = array<i64: 32, 128>}, {transform_indices = @transform_4, window_bounds = array<i64: 1, 1, 32>}]} {
    %c0_i32 = arith.constant 0 : i32
    %0 = arith.cmpi eq, %arg1, %c0_i32 : i32
    %1 = arith.extui %0 : i1 to i32
    %c0_i32_0 = arith.constant 0 : i32
    %2 = arith.cmpi ne, %1, %c0_i32_0 : i32
    scf.if %2 {
      %c0_19 = arith.constant 0 : index
      %c0_20 = arith.constant 0 : index
      %29 = vector.load %arg2[%c0_19, %c0_20] : memref<32x128xf32, #tpu.memory_space<vmem>>, vector<32x128xf32>
      %c0_21 = arith.constant 0 : index
      %c0_22 = arith.constant 0 : index
      %30 = vector.load %arg7[%c0_21, %c0_22] : memref<32x128xf32, #tpu.memory_space<vmem>>, vector<32x128xf32>
      tpu.vector_store %arg7[%c0_21, %c0_22], %29 {strides = array<i32>} : memref<32x128xf32, #tpu.memory_space<vmem>>, vector<32x128xf32>,
      %cst_23 = arith.constant 0.000000e+00 : f32
      %31 = vector.broadcast %cst_23 : f32 to vector<32x128xf32>
      %c0_24 = arith.constant 0 : index
      %c0_25 = arith.constant 0 : index
      %32 = vector.load %arg8[%c0_24, %c0_25] : memref<32x128xf32, #tpu.memory_space<vmem>>, vector<32x128xf32>
      tpu.vector_store %arg8[%c0_24, %c0_25], %31 {strides = array<i32>} : memref<32x128xf32, #tpu.memory_space<vmem>>, vector<32x128xf32>,
    } else {
    }
    %c0 = arith.constant 0 : index
    %c0_1 = arith.constant 0 : index
    %3 = vector.load %arg7[%c0, %c0_1] : memref<32x128xf32, #tpu.memory_space<vmem>>, vector<32x128xf32>
    %c0_2 = arith.constant 0 : index
    %c0_3 = arith.constant 0 : index
    %c0_4 = arith.constant 0 : index
    %4 = vector.load %arg3[%c0_2, %c0_3, %c0_4] : memref<1x128x128xf32, #tpu.memory_space<vmem>>, vector<1x128x128xf32>
    %5 = vector.shape_cast %4 : vector<1x128x128xf32> to vector<128x128xf32>
    %cst = arith.constant dense<0.000000e+00> : vector<32x128xf32>
    %6 = tpu.matmul %3, %5, %cst {dimension_numbers = #tpu.dot_dimension_numbers<[1], [1], [0], [0], [0, 0, 1, 0], [], []>} : vector<32x128xf32>, vector<128x128xf32>, vector<32x128xf32> -> vector<32x128xf32>
    %c0_5 = arith.constant 0 : index
    %c0_6 = arith.constant 0 : index
    %c0_7 = arith.constant 0 : index
    %7 = vector.load %arg4[%c0_5, %c0_6, %c0_7] : memref<1x1x128xf32, #tpu.memory_space<vmem>>, vector<1x1x128xf32>
    %8 = vector.shape_cast %7 : vector<1x1x128xf32> to vector<1x128xf32>
    %9 = vector.broadcast %8 : vector<1x128xf32> to vector<32x128xf32>
    %10 = arith.subf %9, %6 : vector<32x128xf32>
    %11 = tpu.reduce_index %10 {axis = 1 : i32, kind = #tpu.reduction_kind<arg_min>} : vector<32x128xf32> -> vector<32xi32>
    %12 = vector.shape_cast %11 : vector<32xi32> to vector<1x1x32xi32>
    %c0_8 = arith.constant 0 : index
    %c0_9 = arith.constant 0 : index
    %c0_10 = arith.constant 0 : index
    %13 = vector.load %arg6[%c0_8, %c0_9, %c0_10] : memref<1x1x32xi32, #tpu.memory_space<vmem>>, vector<1x1x32xi32>
    tpu.vector_store %arg6[%c0_8, %c0_9, %c0_10], %12 {strides = array<i32>} : memref<1x1x32xi32, #tpu.memory_space<vmem>>, vector<1x1x32xi32>,
    %14 = tpu.iota {dimensions = array<i32: 1>} : vector<32x128xi32>
    %15 = vector.shape_cast %11 : vector<32xi32> to vector<32x1xi32>
    %16 = vector.broadcast %15 : vector<32x1xi32> to vector<32x128xi32>
    %17 = arith.cmpi eq, %14, %16 : vector<32x128xi32>
    %18 = arith.extui %17 : vector<32x128xi1> to vector<32x128xi32>
    %19 = arith.sitofp %18 : vector<32x128xi32> to vector<32x128xf32>
    %cst_11 = arith.constant dense<0.000000e+00> : vector<32x128xf32>
    %20 = tpu.matmul %19, %5, %cst_11 {dimension_numbers = #tpu.dot_dimension_numbers<[1], [0], [0], [1], [0, 0, 1, 1], [], []>} : vector<32x128xf32>, vector<128x128xf32>, vector<32x128xf32> -> vector<32x128xf32>
    %21 = arith.subf %3, %20 : vector<32x128xf32>
    %c0_12 = arith.constant 0 : index
    %c0_13 = arith.constant 0 : index
    %22 = vector.load %arg7[%c0_12, %c0_13] : memref<32x128xf32, #tpu.memory_space<vmem>>, vector<32x128xf32>
    tpu.vector_store %arg7[%c0_12, %c0_13], %21 {strides = array<i32>} : memref<32x128xf32, #tpu.memory_space<vmem>>, vector<32x128xf32>,
    %c0_14 = arith.constant 0 : index
    %c0_15 = arith.constant 0 : index
    %23 = vector.load %arg8[%c0_14, %c0_15] : memref<32x128xf32, #tpu.memory_space<vmem>>, vector<32x128xf32>
    %24 = arith.addf %23, %20 : vector<32x128xf32>
    %c0_16 = arith.constant 0 : index
    %c0_17 = arith.constant 0 : index
    %25 = vector.load %arg8[%c0_16, %c0_17] : memref<32x128xf32, #tpu.memory_space<vmem>>, vector<32x128xf32>
    tpu.vector_store %arg8[%c0_16, %c0_17], %24 {strides = array<i32>} : memref<32x128xf32, #tpu.memory_space<vmem>>, vector<32x128xf32>,
    %c3_i32 = arith.constant 3 : i32
    %26 = arith.cmpi eq, %arg1, %c3_i32 : i32
    %27 = arith.extui %26 : i1 to i32
    %c0_i32_18 = arith.constant 0 : i32
    %28 = arith.cmpi ne, %27, %c0_i32_18 : i32
    scf.if %28 {
      %c0_19 = arith.constant 0 : index
      %c0_20 = arith.constant 0 : index
      %29 = vector.load %arg8[%c0_19, %c0_20] : memref<32x128xf32, #tpu.memory_space<vmem>>, vector<32x128xf32>
      %c0_21 = arith.constant 0 : index
      %c0_22 = arith.constant 0 : index
      %30 = vector.load %arg5[%c0_21, %c0_22] : memref<32x128xf32, #tpu.memory_space<vmem>>, vector<32x128xf32>
      tpu.vector_store %arg5[%c0_21, %c0_22], %29 {strides = array<i32>} : memref<32x128xf32, #tpu.memory_space<vmem>>, vector<32x128xf32>,
    } else {
    }
    return
  }
  func.func @transform_0(%arg0: i32, %arg1: i32) -> (i32, i32) {
    %c0_i32 = arith.constant 0 : i32
    %c0_i32_0 = arith.constant 0 : i32
    return %arg0, %c0_i32 : i32, i32
  }
  func.func @transform_1(%arg0: i32, %arg1: i32) -> (i32, i32, i32) {
    %c0_i32 = arith.constant 0 : i32
    %c0_i32_0 = arith.constant 0 : i32
    %c0_i32_1 = arith.constant 0 : i32
    return %arg1, %c0_i32, %c0_i32_0 : i32, i32, i32
  }
  func.func @transform_2(%arg0: i32, %arg1: i32) -> (i32, i32, i32) {
    %c0_i32 = arith.constant 0 : i32
    %c0_i32_0 = arith.constant 0 : i32
    %c0_i32_1 = arith.constant 0 : i32
    return %arg1, %c0_i32, %c0_i32_0 : i32, i32, i32
  }
  func.func @transform_3(%arg0: i32, %arg1: i32) -> (i32, i32) {
    %c0_i32 = arith.constant 0 : i32
    %c0_i32_0 = arith.constant 0 : i32
    return %arg0, %c0_i32 : i32, i32
  }
  func.func @transform_4(%arg0: i32, %arg1: i32) -> (i32, i32, i32) {
    %c0_i32 = arith.constant 0 : i32
    %c0_i32_0 = arith.constant 0 : i32
    return %arg1, %c0_i32, %arg0 : i32, i32, i32
  }
}

</mosaic_0001>

<llo_original>
// kernel: tpu_custom_call.1
$region0: #{tpu_custom_call.1}
  #allocation0 [shape = 'u32[]', space=smem, size = 0x4, offset = 0x4, fixed_abs, tag = 'smem constant byte address 0x4 - core index']
  #allocation1 [shape = 'u32[72,128]{1,0:T(1,128)}', space=vmem, size = 0x9000, scoped, tag = 'internal scratch']
  #allocation2 [shape = 'f32[32,128]{1,0:T(8,128)}', space=vmem, size = 0x4000, scoped, tag = 'scratch operand']
  #allocation3 [shape = 'f32[32,128]{1,0:T(8,128)}', space=vmem, size = 0x4000, scoped, tag = 'scratch operand']
  %s0 = inlined_call_operand.hbm [shape: f32[32,128], index: 0, kind: input, shape index: {}]
  %s1 = inlined_call_operand.hbm [shape: f32[4,128,128], index: 1, kind: input, shape index: {}]
  %s2 = inlined_call_operand.hbm [shape: f32[4,1,128], index: 2, kind: input, shape index: {}]
  %s3 = inlined_call_operand.hbm [shape: f32[32,128], index: 3, kind: output, shape index: {0}]
  %s4 = inlined_call_operand.hbm [shape: s32[4,1,32], index: 4, kind: output, shape index: {1}]
  %5 = xla_tuple %s3, %s4
  %s6 = sld [smem:[#allocation0]]
  $region73: #{tpu_custom_call.1} parent=0
    _
  %s8 = ssub.s32 1, %s6
  %s9 = scalar_select 0, %s8, %s6
  $region1: #{tpu_custom_call.1} parent=0
    #allocation4 [shape = 'u8[16384]{0}', space=vmem, size = 0x4000, scoped, tag = 'input window, operand 0, single buffered']
    #allocation5 [shape = 's32[2]{0}', space=sflag, size = 0x8, scoped, tag = 'scoped memory for tpu_custom_call.1']
    #allocation6 [shape = 's32[2]{0}', space=sflag, size = 0x8, scoped, tag = 'scoped memory for tpu_custom_call.1']
    #allocation7 [shape = 'u8[131072]{0}', space=vmem, size = 0x20000, scoped, tag = 'input window, operand 1']
    #allocation8 [shape = 's32[2]{0}', space=sflag, size = 0x8, scoped, tag = 'scoped memory for tpu_custom_call.1']
    #allocation9 [shape = 'u8[1024]{0}', space=vmem, size = 0x400, scoped, tag = 'input window, operand 2']
    #allocation10 [shape = 'u8[16384]{0}', space=vmem, size = 0x4000, scoped, tag = 'output window, operand 0, single buffered']
    #allocation11 [shape = 'u8[1024]{0}', space=vmem, size = 0x400, scoped, tag = 'output window, operand 1']
    #allocation12 [shape = 's32[2]{0}', space=sflag, size = 0x8, scoped, tag = 'scoped memory for tpu_custom_call.1']
    %10 = vsyncpa [#allocation5], 0
    %11 = vsyncpa [#allocation8], 0
    %s12 = scalar_lea.sflag [#allocation8], 1
    %13 = vsyncpa %s12, 0
    %14 = vsyncpa [#allocation6], 0
    %15 = vsyncpa [#allocation12], 0
    %s16 = scalar_lea.sflag [#allocation12], 1
    %17 = vsyncpa %s16, 0
    loop: start=0, step=1, limit=6
    $region2: #{tpu_custom_call.1} parent=1 // loop_pre_header
      _
    $region3: #{tpu_custom_call.1} parent=1 // loop_header
      %s19 = sphi 0, %s23
      %p20 = scmp.ge.s32.totalorder %s19, 6
      %s26 = sphi 0, %s38
      %s27 = sphi 0, %s34
      %s28 = sphi 0, %s26
      %s29 = sphi 0, %s27
      %s30 = sphi 0, %s28
      %s31 = sphi 0, %s29
      %s41 = sphi 0, %s43
      %s44 = sphi 0, %s41
      %s45 = sphi 0, %s44
      %s61 = sphi 0, %s45
      %s67 = sphi 0, %s69
      %s70 = sphi 0, %s67
      %s71 = sphi 0, %s70
      %s87 = sphi 0, %s71
      %s93 = sphi 0, %s95
      %s96 = sphi 0, %s93
      %s97 = sphi 0, %s96
      %s113 = sphi 0, %s97
      %s119 = sphi 0, %s121
      %s122 = sphi 0, %s119
      %s123 = sphi 0, %s122
      %s139 = sphi 0, %s123
      %s147 = sphi 0, %s149
      %s150 = sphi 0, %s147
      %s151 = sphi 0, %s150
      %s167 = sphi 0, %s151
    $region4: #{tpu_custom_call.1} parent=1 // loop_header_branch
      %22 = sbr.rel (%p20) target = $region8
    $region5: #{tpu_custom_call.1} parent=1 // loop_body
      %s24 = ssub.s32 %s19, 1
      %s25 = ssub.s32 %s19, 2
      %s32 = sadd.s32 1, %s27
      %p33 = scmp.ge.s32.totalorder %s32, 4
      %s34 = scalar_select %p33, 0, %s32
      %s35 = sadd.s32 1, %s26
      %s36 = scalar_select %p33, %s35, %s26
      %p37 = scmp.ge.s32.totalorder %s36, 1
      %s38 = scalar_select %p37, 0, %s36
      %s39 = ssub.s32 %s26, %s38
      %p40 = scmp.eq.s32.totalorder %s39, 0
      %s42 = sadd.s32 %s41, 1
      %s43 = scalar_select %p40, %s41, %s42
      %p46 = pneg %p40
      %p47 = scmp.eq.s32.totalorder %s19, 3
      %p48 = por %p46, %p47
      %p49 = scmp.ne.s32.totalorder %s41, %s44
      %p50 = scmp.eq.s32.totalorder %s19, 0
      %p51 = por %p49, %p50
      %p52 = scmp.ne.s32.totalorder %s41, %s44
      %p53 = scmp.eq.s32.totalorder %s24, 3
      %p54 = por %p52, %p53
      %p55 = scmp.ne.s32.totalorder %s44, %s45
      %p56 = scmp.eq.s32.totalorder %s24, 0
      %p57 = por %p55, %p56
      %p58 = scmp.ne.s32.totalorder %s44, %s45
      %p59 = scmp.eq.s32.totalorder %s25, 3
      %p60 = por %p58, %p59
      %p62 = scmp.ne.s32.totalorder %s45, %s61
      %p63 = scmp.eq.s32.totalorder %s25, 0
      %p64 = por %p62, %p63
      %s65 = ssub.s32 %s27, %s34
      %p66 = scmp.eq.s32.totalorder %s65, 0
      %s68 = sadd.s32 %s67, 1
      %s69 = scalar_select %p66, %s67, %s68
      %p72 = pneg %p66
      %p73 = scmp.eq.s32.totalorder %s19, 3
      %p74 = por %p72, %p73
      %p75 = scmp.ne.s32.totalorder %s67, %s70
      %p76 = scmp.eq.s32.totalorder %s19, 0
      %p77 = por %p75, %p76
      %p78 = scmp.ne.s32.totalorder %s67, %s70
      %p79 = scmp.eq.s32.totalorder %s24, 3
      %p80 = por %p78, %p79
      %p81 = scmp.ne.s32.totalorder %s70, %s71
      %p82 = scmp.eq.s32.totalorder %s24, 0
      %p83 = por %p81, %p82
      %p84 = scmp.ne.s32.totalorder %s70, %s71
      %p85 = scmp.eq.s32.totalorder %s25, 3
      %p86 = por %p84, %p85
      %p88 = scmp.ne.s32.totalorder %s71, %s87
      %p89 = scmp.eq.s32.totalorder %s25, 0
      %p90 = por %p88, %p89
      %s91 = ssub.s32 %s27, %s34
      %p92 = scmp.eq.s32.totalorder %s91, 0
      %s94 = sadd.s32 %s93, 1
      %s95 = scalar_select %p92, %s93, %s94
      %p98 = pneg %p92
      %p99 = scmp.eq.s32.totalorder %s19, 3
      %p100 = por %p98, %p99
      %p101 = scmp.ne.s32.totalorder %s93, %s96
      %p102 = scmp.eq.s32.totalorder %s19, 0
      %p103 = por %p101, %p102
      %p104 = scmp.ne.s32.totalorder %s93, %s96
      %p105 = scmp.eq.s32.totalorder %s24, 3
      %p106 = por %p104, %p105
      %p107 = scmp.ne.s32.totalorder %s96, %s97
      %p108 = scmp.eq.s32.totalorder %s24, 0
      %p109 = por %p107, %p108
      %p110 = scmp.ne.s32.totalorder %s96, %s97
      %p111 = scmp.eq.s32.totalorder %s25, 3
      %p112 = por %p110, %p111
      %p114 = scmp.ne.s32.totalorder %s97, %s113
      %p115 = scmp.eq.s32.totalorder %s25, 0
      %p116 = por %p114, %p115
      %s117 = ssub.s32 %s26, %s38
      %p118 = scmp.eq.s32.totalorder %s117, 0
      %s120 = sadd.s32 %s119, 1
      %s121 = scalar_select %p118, %s119, %s120
      %p124 = pneg %p118
      %p125 = scmp.eq.s32.totalorder %s19, 3
      %p126 = por %p124, %p125
      %p127 = scmp.ne.s32.totalorder %s119, %s122
      %p128 = scmp.eq.s32.totalorder %s19, 0
      %p129 = por %p127, %p128
      %p130 = scmp.ne.s32.totalorder %s119, %s122
      %p131 = scmp.eq.s32.totalorder %s24, 3
      %p132 = por %p130, %p131
      %p133 = scmp.ne.s32.totalorder %s122, %s123
      %p134 = scmp.eq.s32.totalorder %s24, 0
      %p135 = por %p133, %p134
      %p136 = scmp.ne.s32.totalorder %s122, %s123
      %p137 = scmp.eq.s32.totalorder %s25, 3
      %p138 = por %p136, %p137
      %p140 = scmp.ne.s32.totalorder %s123, %s139
      %p141 = scmp.eq.s32.totalorder %s25, 0
      %p142 = por %p140, %p141
      %s143 = ssub.s32 %s27, %s34
      %s144 = ssub.s32 %s26, %s38
      %s145 = sor.u32 %s143, %s144
      %p146 = scmp.eq.s32.totalorder %s145, 0
      %s148 = sadd.s32 %s147, 1
      %s149 = scalar_select %p146, %s147, %s148
      %p152 = pneg %p146
      %p153 = scmp.eq.s32.totalorder %s19, 3
      %p154 = por %p152, %p153
      %p155 = scmp.ne.s32.totalorder %s147, %s150
      %p156 = scmp.eq.s32.totalorder %s19, 0
      %p157 = por %p155, %p156
      %p158 = scmp.ne.s32.totalorder %s147, %s150
      %p159 = scmp.eq.s32.totalorder %s24, 3
      %p160 = por %p158, %p159
      %p161 = scmp.ne.s32.totalorder %s150, %s151
      %p162 = scmp.eq.s32.totalorder %s24, 0
      %p163 = por %p161, %p162
      %p164 = scmp.ne.s32.totalorder %s150, %s151
      %p165 = scmp.eq.s32.totalorder %s25, 3
      %p166 = por %p164, %p165
      %p168 = scmp.ne.s32.totalorder %s151, %s167
      %p169 = scmp.eq.s32.totalorder %s25, 0
      %p170 = por %p168, %p169
      %p171 = scmp.le.s32.totalorder 1, %s19
      %p172 = scmp.lt.s32.totalorder %s19, 5
      %p173 = pnand %p171, %p172
      %p174 = pneg %p173
      // Predicated region
      $region9: #{tpu_custom_call.1} parent=5 // pred_check
        _
      $region10: #{tpu_custom_call.1} parent=5 // pred_check_branch
        %176 = sbr.rel (%p173) target = $region12
      $region11: #{tpu_custom_call.1} parent=5 // pred_region
        %s177 = ssub.s32 %s19, 1
        // Predicated region
        $region13: #{tpu_custom_call.1} parent=11 // pred_check
          %p178 = pneg %p57
        $region14: #{tpu_custom_call.1} parent=11 // pred_check_branch
          %180 = sbr.rel (%p178) target = $region16
        $region15: #{tpu_custom_call.1} parent=11 // pred_region
          %s181 = smul.u32 4, %s28
          %183 = vsyncadd [#allocation5], 0
          %s184 = smul.addr %s181, 8
          %s185 = scalar_lea.hbm %s0, %s184
          %s186 = sshll.u32 %s185, 4
          %s187 = int_to_ptr.hbm [resolvable:$true] %s186
          %s188 = sshll.u32 [#allocation4], 4
          %s189 = int_to_ptr.vmem [resolvable:$true] %s188
          %194 = dma.hbm_to_vmem [thread:$0]  %s187, 512, %s189, [#allocation5], 128, 128, 8
        $region16: #{tpu_custom_call.1} parent=11 // pred_fallthru
          _
      $region12: #{tpu_custom_call.1} parent=5 // pred_fallthru
        _
      %p195 = scmp.lt.s32.totalorder %s19, 4
      // Predicated region
      $region17: #{tpu_custom_call.1} parent=5 // pred_check
        %p196 = pneg %p195
      $region18: #{tpu_custom_call.1} parent=5 // pred_check_branch
        %198 = sbr.rel (%p196) target = $region20
      $region19: #{tpu_custom_call.1} parent=5 // pred_region
        // Predicated region
        $region21: #{tpu_custom_call.1} parent=19 // pred_check
          %p199 = pneg %p77
        $region22: #{tpu_custom_call.1} parent=19 // pred_check_branch
          %201 = sbr.rel (%p199) target = $region24
        $region23: #{tpu_custom_call.1} parent=19 // pred_region
          %s202 = sand.u32 %s19, 1
          %s203 = scalar_lea.sflag [#allocation8], %s202
          %s204 = sand.u32 %s67, 1
          %s205 = smul.addr %s204, 128
          %s206 = scalar_lea.vmem [#allocation7], %s205
          %208 = vsyncadd %s203, 0
          %s209 = smul.addr %s27, 16
          %s210 = smul.addr %s209, 8
          %s211 = scalar_lea.hbm %s1, %s210
          %s212 = sshll.u32 %s211, 4
          %s213 = int_to_ptr.hbm [resolvable:$true] %s212
          %s214 = sshll.u32 %s206, 4
          %s215 = int_to_ptr.vmem [resolvable:$true] %s214
          %220 = dma.hbm_to_vmem [thread:$0]  %s213, 2048, %s215, %s203, 128, 128, 8
        $region24: #{tpu_custom_call.1} parent=19 // pred_fallthru
          _
        // Predicated region
        $region25: #{tpu_custom_call.1} parent=19 // pred_check
          %p221 = pneg %p103
        $region26: #{tpu_custom_call.1} parent=19 // pred_check_branch
          %223 = sbr.rel (%p221) target = $region28
        $region27: #{tpu_custom_call.1} parent=19 // pred_region
          %s224 = sand.u32 %s19, 1
          %s225 = scalar_lea.sflag [#allocation8], %s224
          %s226 = sand.u32 %s93, 1
          %s227 = scalar_lea.vmem [#allocation9], %s226
          %229 = vsyncadd %s225, 0
          %s230 = scalar_lea.hbm %s2, %s27
          %s232 = sshll.u32 %s230, 4
          %s233 = int_to_ptr.hbm [resolvable:$true] %s232
          %s234 = sshll.u32 %s227, 4
          %s235 = int_to_ptr.vmem [resolvable:$true] %s234
          %237 = dma.hbm_to_vmem [thread:$0]  %s233, 16, %s235, %s225
        $region28: #{tpu_custom_call.1} parent=19 // pred_fallthru
          _
      $region20: #{tpu_custom_call.1} parent=5 // pred_fallthru
        _
      %p238 = scmp.le.s32.totalorder 1, %s19
      %p239 = scmp.lt.s32.totalorder %s19, 5
      %p240 = pnand %p238, %p239
      %p241 = pneg %p240
      // Predicated region
      $region29: #{tpu_custom_call.1} parent=5 // pred_check
        _
      $region30: #{tpu_custom_call.1} parent=5 // pred_check_branch
        %243 = sbr.rel (%p240) target = $region32
      $region31: #{tpu_custom_call.1} parent=5 // pred_region
        %s244 = ssub.s32 %s19, 1
        // Predicated region
        $region33: #{tpu_custom_call.1} parent=31 // pred_check
          %p245 = pneg %p57
        $region34: #{tpu_custom_call.1} parent=31 // pred_check_branch
          %247 = sbr.rel (%p245) target = $region36
        $region35: #{tpu_custom_call.1} parent=31 // pred_region
          %249 = dma.done [#allocation5], 512
        $region36: #{tpu_custom_call.1} parent=31 // pred_fallthru
          _
        %s250 = sand.u32 %s24, 1
        %s251 = scalar_lea.sflag [#allocation8], %s250
        %s252 = sand.u32 %s70, 1
        %s253 = smul.addr %s252, 128
        %s254 = scalar_lea.vmem [#allocation7], %s253
        // Predicated region
        $region37: #{tpu_custom_call.1} parent=31 // pred_check
          %p255 = pneg %p83
        $region38: #{tpu_custom_call.1} parent=31 // pred_check_branch
          %257 = sbr.rel (%p255) target = $region40
        $region39: #{tpu_custom_call.1} parent=31 // pred_region
          %259 = dma.done %s251, 2048
        $region40: #{tpu_custom_call.1} parent=31 // pred_fallthru
          _
        %s260 = sand.u32 %s24, 1
        %s261 = scalar_lea.sflag [#allocation8], %s260
        %s262 = sand.u32 %s96, 1
        %s263 = scalar_lea.vmem [#allocation9], %s262
        // Predicated region
        $region41: #{tpu_custom_call.1} parent=31 // pred_check
          %p264 = pneg %p109
        $region42: #{tpu_custom_call.1} parent=31 // pred_check_branch
          %266 = sbr.rel (%p264) target = $region44
        $region43: #{tpu_custom_call.1} parent=31 // pred_region
          %268 = dma.done %s261, 16
        $region44: #{tpu_custom_call.1} parent=31 // pred_fallthru
          _
        %p269 = pneg %p57
        %p270 = pneg %p54
        %s271 = sand.u32 %s24, 1
        %s272 = scalar_lea.sflag [#allocation8], %s271
        %s273 = sand.u32 %s70, 1
        %s274 = smul.addr %s273, 128
        %s275 = scalar_lea.vmem [#allocation7], %s274
        %p276 = pneg %p83
        %p277 = pneg %p80
        %s278 = sand.u32 %s24, 1
        %s279 = scalar_lea.sflag [#allocation8], %s278
        %s280 = sand.u32 %s96, 1
        %s281 = scalar_lea.vmem [#allocation9], %s280
        %p282 = pneg %p109
        %p283 = pneg %p106
        %p284 = pneg %p135
        %p285 = pneg %p132
        %p286 = pneg %p163
        %p287 = pneg %p160
        %s288 = sand.u32 %s150, 1
        %s289 = scalar_lea.sflag [#allocation12], %s288
        %s290 = sand.u32 %s150, 1
        %s291 = scalar_lea.vmem [#allocation11], %s290
        %s292 = smul.u32 4, %s28
        %s293 = smul.u32 4, %s28
        %p294 = scmp.eq.s32.totalorder %s29, 0
        // Predicated region
        $region45: #{tpu_custom_call.1} parent=31 // pred_check
          %p295 = pneg %p294
        $region46: #{tpu_custom_call.1} parent=31 // pred_check_branch
          %297 = sbr.rel (%p295) target = $region48
        $region47: #{tpu_custom_call.1} parent=31 // pred_region
          %v298 = vld [vmem:[#allocation4] sm:$0xff]
          %v299 = vld [vmem:[#allocation4 + $0x8] sm:$0xff]
          %v300 = vld [vmem:[#allocation4 + $0x10] sm:$0xff]
          %v301 = vld [vmem:[#allocation4 + $0x18] sm:$0xff]
          %302 = vst [vmem:[#allocation2] sm:$0xff] %v298
          %303 = vst [vmem:[#allocation2 + $0x8] sm:$0xff] %v299
          %304 = vst [vmem:[#allocation2 + $0x10] sm:$0xff] %v300
          %305 = vst [vmem:[#allocation2 + $0x18] sm:$0xff] %v301
          %306 = vst [vmem:[#allocation3] sm:$0xff] 0.0
          %307 = vst [vmem:[#allocation3 + $0x8] sm:$0xff] 0.0
          %308 = vst [vmem:[#allocation3 + $0x10] sm:$0xff] 0.0
          %309 = vst [vmem:[#allocation3 + $0x18] sm:$0xff] 0.0
        $region48: #{tpu_custom_call.1} parent=31 // pred_fallthru
          _
        %v310 = vld [vmem:[#allocation2] sm:$0xff]
        %v311 = vld [vmem:[#allocation2 + $0x8] sm:$0xff]
        %v312 = vld [vmem:[#allocation2 + $0x10] sm:$0xff]
        %v313 = vld [vmem:[#allocation2 + $0x18] sm:$0xff]
        %v314 = vld [vmem:[%s254] sm:$0xff]
        %v315 = vld [vmem:[%s254 + $0x8] sm:$0xff]
        %v316 = vld [vmem:[%s254 + $0x10] sm:$0xff]
        %v317 = vld [vmem:[%s254 + $0x18] sm:$0xff]
        %v318 = vld [vmem:[%s254 + $0x20] sm:$0xff]
        %v319 = vld [vmem:[%s254 + $0x28] sm:$0xff]
        %v320 = vld [vmem:[%s254 + $0x30] sm:$0xff]
        %v321 = vld [vmem:[%s254 + $0x38] sm:$0xff]
        %v322 = vld [vmem:[%s254 + $0x40] sm:$0xff]
        %v323 = vld [vmem:[%s254 + $0x48] sm:$0xff]
        %v324 = vld [vmem:[%s254 + $0x50] sm:$0xff]
        %v325 = vld [vmem:[%s254 + $0x58] sm:$0xff]
        %v326 = vld [vmem:[%s254 + $0x60] sm:$0xff]
        %v327 = vld [vmem:[%s254 + $0x68] sm:$0xff]
        %v328 = vld [vmem:[%s254 + $0x70] sm:$0xff]
        %v329 = vld [vmem:[%s254 + $0x78] sm:$0xff]
        %330 = vmatpush.xpose.msra.mxu0 %v329
        %331 = vmatpush.xpose.msra.mxu0 %v328
        %332 = vmatpush.xpose.msra.mxu0 %v327
        %333 = vmatpush.xpose.msra.mxu0 %v326
        %334 = vmatpush.xpose.msra.mxu0 %v325
        %335 = vmatpush.xpose.msra.mxu0 %v324
        %336 = vmatpush.xpose.msra.mxu0 %v323
        %337 = vmatpush.xpose.msra.mxu0 %v322
        %338 = vmatpush.xpose.msra.mxu0 %v321
        %339 = vmatpush.xpose.msra.mxu0 %v320
        %340 = vmatpush.xpose.msra.mxu0 %v319
        %341 = vmatpush.xpose.msra.mxu0 %v318
        %342 = vmatpush.xpose.msra.mxu0 %v317
        %343 = vmatpush.xpose.msra.mxu0 %v316
        %344 = vmatpush.xpose.msra.mxu0 %v315
        %345 = vmatpush.xpose.msra.mxu0 %v314
        %346 = vmatmul.f32.gmra.mxu0 %v310
        %v347 = vpop.f32.mrf.mxu0
        %v348 = vadd.f32 0.0, %v347
        %349 = vmatmul.f32.gmra.mxu0 %v311
        %v350 = vpop.f32.mrf.mxu0
        %v351 = vadd.f32 0.0, %v350
        %352 = vmatmul.f32.gmra.mxu0 %v312
        %v353 = vpop.f32.mrf.mxu0
        %v354 = vadd.f32 0.0, %v353
        %355 = vmatmul.f32.gmra.mxu0 %v313
        %v356 = vpop.f32.mrf.mxu0
        %v357 = vadd.f32 0.0, %v356
        %358 = vdwg.mxu0
        %v359 = vld [vmem:[%s263] sm:$0x1]
        %v361 = vperm.slane %v359, 0
        %v363 = vsub.f32 %v361, %v348
        %v364 = vsub.f32 %v361, %v351
        %v365 = vsub.f32 %v361, %v354
        %v366 = vsub.f32 %v361, %v357
        %367 = vmin.index.xlane.f32.xlu0 %v363
        %v368 = vpop.xlane.xlu0 %367
        %369 = vmin.index.xlane.f32.xlu0 %v364
        %v370 = vpop.xlane.xlu0 %369
        %371 = vmin.index.xlane.f32.xlu0 %v365
        %v372 = vpop.xlane.xlu0 %371
        %373 = vmin.index.xlane.f32.xlu0 %v366
        %v374 = vpop.xlane.xlu0 %373
        %v375 = vlaneseq
        %v376 = vand.u32 %v375, 127
        %v377 = vperm.slane %v368, %v376
        %v378 = vadd.s32 %v376, 4294967288
        %v379 = vperm.slane %v370, %v378
        %vm380 = vcmask 130112
        %v381 = vsel %vm380, %v379, %v377
        %v382 = vadd.s32 %v376, 4294967280
        %v383 = vperm.slane %v372, %v382
        %vm384 = vcmask 195712
        %v385 = vsel %vm384, %v383, %v381
        %v386 = vadd.s32 %v376, 4294967272
        %v387 = vperm.slane %v374, %v386
        %vm388 = vcmask 261312
        %v389 = vsel %vm388, %v387, %v385
        %vm390 = vcmask 253952
        %391 = vst.msk [vmem:[%s291] sm:$0x1] %vm390, %v389
        %vm392 = vcmp.eq.s32.totalorder %v376, %v368
        %vm393 = vcmp.eq.s32.totalorder %v376, %v370
        %vm394 = vcmp.eq.s32.totalorder %v376, %v372
        %vm395 = vcmp.eq.s32.totalorder %v376, %v374
        %v396 = vsel %vm392, 1, 0
        %v397 = vsel %vm393, 1, 0
        %v398 = vsel %vm394, 1, 0
        %v399 = vsel %vm395, 1, 0
        %v400 = vcvt.s32.f32 %v396
        %v401 = vcvt.s32.f32 %v397
        %v402 = vcvt.s32.f32 %v398
        %v403 = vcvt.s32.f32 %v399
        %404 = vmatpush.msra.mxu0 %v329
        %405 = vmatpush.msra.mxu0 %v328
        %406 = vmatpush.msra.mxu0 %v327
        %407 = vmatpush.msra.mxu0 %v326
        %408 = vmatpush.msra.mxu0 %v325
        %409 = vmatpush.msra.mxu0 %v324
        %410 = vmatpush.msra.mxu0 %v323
        %411 = vmatpush.msra.mxu0 %v322
        %412 = vmatpush.msra.mxu0 %v321
        %413 = vmatpush.msra.mxu0 %v320
        %414 = vmatpush.msra.mxu0 %v319
        %415 = vmatpush.msra.mxu0 %v318
        %416 = vmatpush.msra.mxu0 %v317
        %417 = vmatpush.msra.mxu0 %v316
        %418 = vmatpush.msra.mxu0 %v315
        %419 = vmatpush.msra.mxu0 %v314
        %420 = vmatmul.f32.gmra.mxu0 %v400
        %v421 = vpop.f32.mrf.mxu0
        %v422 = vadd.f32 0.0, %v421
        %423 = vmatmul.f32.gmra.mxu0 %v401
        %v424 = vpop.f32.mrf.mxu0
        %v425 = vadd.f32 0.0, %v424
        %426 = vmatmul.f32.gmra.mxu0 %v402
        %v427 = vpop.f32.mrf.mxu0
        %v428 = vadd.f32 0.0, %v427
        %429 = vmatmul.f32.gmra.mxu0 %v403
        %v430 = vpop.f32.mrf.mxu0
        %v431 = vadd.f32 0.0, %v430
        %432 = vdwg.mxu0
        %v433 = vsub.f32 %v310, %v422
        %v434 = vsub.f32 %v311, %v425
        %v435 = vsub.f32 %v312, %v428
        %v436 = vsub.f32 %v313, %v431
        %437 = vst [vmem:[#allocation2] sm:$0xff] %v433
        %438 = vst [vmem:[#allocation2 + $0x8] sm:$0xff] %v434
        %439 = vst [vmem:[#allocation2 + $0x10] sm:$0xff] %v435
        %440 = vst [vmem:[#allocation2 + $0x18] sm:$0xff] %v436
        %v441 = vld [vmem:[#allocation3] sm:$0xff]
        %v442 = vld [vmem:[#allocation3 + $0x8] sm:$0xff]
        %v443 = vld [vmem:[#allocation3 + $0x10] sm:$0xff]
        %v444 = vld [vmem:[#allocation3 + $0x18] sm:$0xff]
        %v445 = vadd.f32 %v441, %v422
        %v446 = vadd.f32 %v442, %v425
        %v447 = vadd.f32 %v443, %v428
        %v448 = vadd.f32 %v444, %v431
        %449 = vst [vmem:[#allocation3] sm:$0xff] %v445
        %450 = vst [vmem:[#allocation3 + $0x8] sm:$0xff] %v446
        %451 = vst [vmem:[#allocation3 + $0x10] sm:$0xff] %v447
        %452 = vst [vmem:[#allocation3 + $0x18] sm:$0xff] %v448
        %p453 = scmp.eq.s32.totalorder %s29, 3
        // Predicated region
        $region49: #{tpu_custom_call.1} parent=31 // pred_check
          %p454 = pneg %p453
        $region50: #{tpu_custom_call.1} parent=31 // pred_check_branch
          %456 = sbr.rel (%p454) target = $region52
        $region51: #{tpu_custom_call.1} parent=31 // pred_region
          %v457 = vld [vmem:[#allocation3] sm:$0xff]
          %v458 = vld [vmem:[#allocation3 + $0x8] sm:$0xff]
          %v459 = vld [vmem:[#allocation3 + $0x10] sm:$0xff]
          %v460 = vld [vmem:[#allocation3 + $0x18] sm:$0xff]
          %461 = vst [vmem:[#allocation10] sm:$0xff] %v457
          %462 = vst [vmem:[#allocation10 + $0x8] sm:$0xff] %v458
          %463 = vst [vmem:[#allocation10 + $0x10] sm:$0xff] %v459
          %464 = vst [vmem:[#allocation10 + $0x18] sm:$0xff] %v460
        $region52: #{tpu_custom_call.1} parent=31 // pred_fallthru
          _
        %s465 = sand.u32 %s150, 1
        %s466 = scalar_lea.sflag [#allocation12], %s465
        %s467 = sand.u32 %s150, 1
        %s468 = scalar_lea.vmem [#allocation11], %s467
        // Predicated region
        $region53: #{tpu_custom_call.1} parent=31 // pred_check
          %p469 = pneg %p132
        $region54: #{tpu_custom_call.1} parent=31 // pred_check_branch
          %471 = sbr.rel (%p469) target = $region56
        $region55: #{tpu_custom_call.1} parent=31 // pred_region
          %s472 = smul.u32 4, %s28
          %474 = vsyncadd [#allocation6], 0
          %s475 = smul.addr %s472, 8
          %s476 = scalar_lea.hbm %s3, %s475
          %s477 = sshll.u32 [#allocation10], 4
          %s478 = int_to_ptr.vmem [resolvable:$true] %s477
          %s479 = sshll.u32 %s476, 4
          %s480 = int_to_ptr.hbm [resolvable:$true] %s479
          %485 = dma.vmem_to_hbm [thread:$0]  %s478, 512, %s480, [#allocation6], 128, 128, 8
        $region56: #{tpu_custom_call.1} parent=31 // pred_fallthru
          _
        // Predicated region
        $region57: #{tpu_custom_call.1} parent=31 // pred_check
          %p486 = pneg %p160
        $region58: #{tpu_custom_call.1} parent=31 // pred_check_branch
          %488 = sbr.rel (%p486) target = $region60
        $region59: #{tpu_custom_call.1} parent=31 // pred_region
          %490 = vsyncadd %s466, 0
          %s491 = sadd.s32 %s28, %s29
          %s492 = scalar_lea.hbm %s4, %s491
          %s494 = sshll.u32 %s468, 4
          %s495 = int_to_ptr.vmem [resolvable:$true] %s494
          %s496 = sshll.u32 %s492, 4
          %s497 = int_to_ptr.hbm [resolvable:$true] %s496
          %499 = dma.vmem_to_hbm [thread:$0]  %s495, 16, %s497, %s466
        $region60: #{tpu_custom_call.1} parent=31 // pred_fallthru
          _
        // Predicated region
        $region61: #{tpu_custom_call.1} parent=31 // pred_check
          %p500 = pneg %p132
        $region62: #{tpu_custom_call.1} parent=31 // pred_check_branch
          %502 = sbr.rel (%p500) target = $region64
        $region63: #{tpu_custom_call.1} parent=31 // pred_region
          %504 = dma.done [#allocation6], 512
        $region64: #{tpu_custom_call.1} parent=31 // pred_fallthru
          _
      $region32: #{tpu_custom_call.1} parent=5 // pred_fallthru
        _
      %p505 = scmp.le.s32.totalorder 2, %s19
      // Predicated region
      $region65: #{tpu_custom_call.1} parent=5 // pred_check
        %p506 = pneg %p505
      $region66: #{tpu_custom_call.1} parent=5 // pred_check_branch
        %508 = sbr.rel (%p506) target = $region68
      $region67: #{tpu_custom_call.1} parent=5 // pred_region
        %s509 = ssub.s32 %s19, 2
        // Predicated region
        $region69: #{tpu_custom_call.1} parent=67 // pred_check
          %p510 = pneg %p166
        $region70: #{tpu_custom_call.1} parent=67 // pred_check_branch
          %512 = sbr.rel (%p510) target = $region72
        $region71: #{tpu_custom_call.1} parent=67 // pred_region
          %s513 = sand.u32 %s151, 1
          %s514 = scalar_lea.sflag [#allocation12], %s513
          %s515 = sand.u32 %s151, 1
          %s516 = scalar_lea.vmem [#allocation11], %s515
          %518 = dma.done %s514, 16
        $region72: #{tpu_custom_call.1} parent=67 // pred_fallthru
          _
      $region68: #{tpu_custom_call.1} parent=5 // pred_fallthru
        _
    $region6: #{tpu_custom_call.1} parent=1 // loop_footer
      %s23 = sadd.s32 1, %s19
    $region7: #{tpu_custom_call.1} parent=1 // loop_footer_branch
      %18 = sbr.rel target = $region3
    $region8: #{tpu_custom_call.1} parent=1 // loop_exit
      _
    %519 = vsyncpa [#allocation5], 1
    %s520 = scalar_lea.sflag [#allocation5], 1
    %521 = vsyncpa %s520, 1
    %522 = vsyncpa [#allocation8], 1
    %s523 = scalar_lea.sflag [#allocation8], 1
    %524 = vsyncpa %s523, 1
    %525 = vsyncpa [#allocation6], 1
    %s526 = scalar_lea.sflag [#allocation6], 1
    %527 = vsyncpa %s526, 1
    %528 = vsyncpa [#allocation12], 1
    %s529 = scalar_lea.sflag [#allocation12], 1
    %530 = vsyncpa %s529, 1

</llo_original>
